<compile_context>
chip_gen: v7x
topology: tpu7x:2x2x1
jax: 0.10.0
libtpu: 0.0.40
codegen_flags: <defaults>
</compile_context>

<pallas_src>
import jax
import jax.numpy as jnp
from jax.experimental import pallas as pl
from jax.experimental.pallas import tpu as pltpu


def _round_up(n, m):
    return ((n + m - 1) // m) * m


_ALIGN = 16                      # sublane alignment (bf16 packs 2 rows/sublane)
_SUB_ROWS = 512                  # in-kernel row chunk (keeps f32 temporaries small)
_TILE_VMEM_BUDGET = 16 * 1024 * 1024   # double-buffered tile budget, safe on v5e/v6e/v7x
_VMEM_LIMIT_BYTES = 48 * 1024 * 1024   # explicit scoped-VMEM limit (v5e default is 16 MiB)


def _choose_tiles(N, P, S, block_rows):
    """Pick (rows-per-grid-tile, rows-per-in-kernel-sub-block)."""
    # Per-row bytes, double buffered: x (bf16) + eps (f32) + out (f32).
    per_row = 2 * (P * 2) + 2 * (S * 4) + 2 * (S * 4)
    vmem_rows = max(_ALIGN, _TILE_VMEM_BUDGET // per_row)
    # Keep >= 2 grid tiles when N is small/medium so v7x's 2 TCs both get work.
    half_n = _round_up(max(-(-N // 2), _ALIGN), _ALIGN)
    n_t = max(_ALIGN, min(block_rows, vmem_rows, half_n))
    if n_t >= _SUB_ROWS:
        n_t = (n_t // _SUB_ROWS) * _SUB_ROWS     # multiple of the in-kernel chunk
        sub = _SUB_ROWS
    else:
        n_t = _round_up(n_t, _ALIGN)
        sub = n_t
    return n_t, sub


# ----------------------------- Pallas kernel ------------------------------ #
def _make_kernel(sub_rows: int, num_sub: int):
    """Kernel factory: closes over the static in-kernel chunking."""

    def kernel(
        x_ref,      # (N_T, P)  bf16 input tile
        wp_ref,     # (2, P)    f32 packed [e_w; var_w] (precomputed in wrapper)
        bias_ref,   # (2,)      SMEM f32: [bias_mu, bias_sigma**2]
        eps_ref,    # (N_T, S)  activation-noise tile (S Monte-Carlo draws)
        out_ref,    # (N_T, S)  sigmoid(activations) tile
    ):
        e_w = wp_ref[0:1, :]                 # (1, P) f32
        var_w = wp_ref[1:2, :]               # (1, P) f32
        b_mu = bias_ref[0]                   # scalars from SMEM (sreg reads)
        b_sig2 = bias_ref[1]

        def process(r):
            xs = x_ref[pl.ds(r, sub_rows), :].astype(jnp.float32)   # (sub, P)
            # Width-1 "matmuls" on the VPU/XLU (mul + lane reduce), not the MXU.
            e_b = jnp.sum(xs * e_w, axis=1, keepdims=True) + b_mu            # (sub,1)
            var_b = jnp.sum((xs * xs) * var_w, axis=1, keepdims=True) + b_sig2
            eps = eps_ref[pl.ds(r, sub_rows), :].astype(jnp.float32)         # (sub,S)
            act = e_b + jnp.sqrt(var_b) * eps                                # (sub,S)
            # sigmoid(a) = 0.5*(1 + tanh(a/2)): one EUP push instead of exp+recip.
            out_ref[pl.ds(r, sub_rows), :] = 0.5 * (1.0 + jnp.tanh(0.5 * act))

        if num_sub == 1:
            process(0)
        else:
            def body(j, carry):
                process(pl.multiple_of(j * sub_rows, sub_rows))
                return carry
            jax.lax.fori_loop(0, num_sub, body, 0, unroll=min(num_sub, 8))

    return kernel


# ------------------------------ wrapper ------------------------------------ #
def bayesian_network_forward(x, params, eps_act, z_k, *, block_rows=16384):
    """Fused BayesianLinear + sigmoid forward, tiled over the batch axis.

    x:       (N, P) design matrix.
    eps_act: (N,), (N, 1) or (N, S) activation noise. S > 1 amortizes the x
             read across S Monte-Carlo draws and makes the output lane-dense
             when S is a multiple of 128.
    Returns (N, S) float32 probabilities (S=1 matches the PyTorch module).
    """
    N, P = x.shape
    eps = eps_act if eps_act.ndim > 1 else eps_act[:, None]
    S = eps.shape[1]

    n_t, sub = _choose_tiles(N, P, S, block_rows)
    num_sub = n_t // sub
    n_pad = _round_up(N, n_t)
    num_tiles = n_pad // n_t

    # bf16 x halves HBM traffic; kernel upcasts to f32 before the reductions.
    x_bf = x.astype(jnp.bfloat16)
    if n_pad != N:
        x_bf = jnp.pad(x_bf, ((0, n_pad - N), (0, 0)))
        eps = jnp.pad(eps, ((0, n_pad - N), (0, 0)))

    # e_w / var_w precomputed with exact sigmoid/softplus (guarantees var_w>=0),
    # packed into a single (2, P) DMA.
    alpha_q = jax.nn.sigmoid(params["lambdal"])
    w_sigma = jax.nn.softplus(params["weight_rho"])
    mu_z = params["weight_mu"] * z_k.reshape(1, P)
    e_w = mu_z * alpha_q
    var_w = alpha_q * (w_sigma * w_sigma + (1.0 - alpha_q) * mu_z * mu_z)
    packed_w = jnp.concatenate([e_w, var_w], axis=0).astype(jnp.float32)    # (2, P)

    # Bias scalars -> SMEM.
    b_sigma = jax.nn.softplus(params["bias_rho"])
    bias_scalars = jnp.concatenate(
        [params["bias_mu"], b_sigma * b_sigma]).astype(jnp.float32)         # (2,)

    out = pl.pallas_call(
        _make_kernel(sub, num_sub),
        out_shape=jax.ShapeDtypeStruct((n_pad, S), jnp.float32),
        grid=(num_tiles,),
        in_specs=[
            pl.BlockSpec((n_t, P), lambda i: (i, 0)),                 # x tile (bf16)
            pl.BlockSpec((2, P), lambda i: (0, 0)),                   # packed e_w/var_w
            pl.BlockSpec(memory_space=pltpu.MemorySpace.SMEM),        # bias scalars
            pl.BlockSpec((n_t, S), lambda i: (i, 0)),                 # eps tile
        ],
        out_specs=pl.BlockSpec((n_t, S), lambda i: (i, 0)),
        compiler_params=pltpu.CompilerParams(
            dimension_semantics=("parallel",),                        # v7x: 2 TCs
            vmem_limit_bytes=_VMEM_LIMIT_BYTES),                      # v5e: >16 MiB scoped
    )(x_bf, packed_w, bias_scalars, eps)
    return out[:N]


# ------------------------------ JAX glue ----------------------------------- #
def init_params(key, in_features, out_features=1):
    """Deterministic parameter init matching BayesianLinear.__init__ ranges.
    (r0_c / r0_b1 / r0_b2 only affect the KL side effect, not the output.)"""
    ks = jax.random.split(key, 7)
    u = jax.random.uniform
    n = jax.random.normal
    return {
        "weight_mu": u(ks[0], (out_features, in_features), jnp.float32, -0.01, 0.01),
        "weight_rho": u(ks[1], (out_features, in_features), jnp.float32, -5.0, -4.0),
        "lambdal": u(ks[2], (out_features, in_features), jnp.float32, 1.5, 2.5),
        "bias_mu": u(ks[3], (out_features,), jnp.float32, -0.01, 0.01),
        "bias_rho": u(ks[4], (out_features,), jnp.float32, -5.0, -4.0),
        "q0_mean": 0.001 * n(ks[5], (in_features,), jnp.float32),
        "q0_log_var": -9.0 + 0.001 * n(ks[6], (in_features,), jnp.float32),
    }


def sample_z(key, params):
    """sample_z(): z = q0_mean + sqrt(exp(q0_log_var)) * eps, then z_flow."""
    q0_std = jnp.sqrt(jnp.exp(params["q0_log_var"]))
    eps_z = jax.random.normal(key, q0_std.shape, jnp.float32)
    z = params["q0_mean"] + q0_std * eps_z
    # TODO(synk): PropagateFlow('IAF', in_features, 2) is not defined in the
    # provided source; the normalizing flow is applied as identity here.
    z_k = z
    return z_k


if __name__ == "__main__":
    P = 64                      # p - 1 covariates

    root = jax.random.PRNGKey(0)
    k_param, k_x1, k_x2, k_z, k_e1, k_e2 = jax.random.split(root, 6)

    params = init_params(k_param, P)
    z_k = sample_z(k_z, params)

    fwd = jax.jit(bayesian_network_forward, static_argnames=("block_rows",))

    def reference(x, eps):
        """Pure-JAX reference of BayesianLinear.forward + sigmoid (exact math)."""
        alpha_q = jax.nn.sigmoid(params["lambdal"])
        w_sigma = jnp.log1p(jnp.exp(params["weight_rho"]))
        b_sigma = jnp.log1p(jnp.exp(params["bias_rho"]))
        e_w = params["weight_mu"] * alpha_q * z_k
        var_w = alpha_q * (w_sigma ** 2 + (1 - alpha_q) * (params["weight_mu"] * z_k) ** 2)
        e_b = x @ e_w.T + params["bias_mu"]
        var_b = (x ** 2) @ var_w.T + b_sigma ** 2
        return jax.nn.sigmoid(e_b + jnp.sqrt(var_b) * eps)

    # Case 1: module-exact single draw (N, 1). Small batch -> padding + a
    # 2-tile pipelined grid (v7x megacore heuristic keeps both TCs busy).
    N1 = 200
    x1 = jax.random.normal(k_x1, (N1, P), jnp.float32)
    eps1 = jax.random.normal(k_e1, (N1, 1), jnp.float32)
    out1 = jax.block_until_ready(fwd(x1, params, eps1, z_k))
    ref1 = reference(x1, eps1)
    assert out1.shape == (N1, 1) and out1.dtype == jnp.float32
    assert jnp.allclose(out1, ref1, atol=5e-3, rtol=5e-3), "case-1 mismatch"

    # Case 2: Monte-Carlo batched draws (N, S=128): x read once per 128 draws,
    # lane-dense output block, exercises the in-kernel 512-row sub-block loop.
    N2, S2 = 2056, 128
    x2 = jax.random.normal(k_x2, (N2, P), jnp.float32)
    eps2 = jax.random.normal(k_e2, (N2, S2), jnp.float32)
    out2 = jax.block_until_ready(fwd(x2, params, eps2, z_k))
    ref2 = reference(x2, eps2)
    assert out2.shape == (N2, S2) and out2.dtype == jnp.float32
    assert jnp.allclose(out2, ref2, atol=5e-3, rtol=5e-3), "case-2 mismatch"

    print("KERNEL_OK")
</pallas_src>

<mosaic_0001>
module attributes {stable_mosaic.version = 11 : i64} {
  func.func @kernel(%arg0: i32, %arg1: memref<112x64xbf16, #tpu.memory_space<vmem>>, %arg2: memref<2x64xf32, #tpu.memory_space<vmem>>, %arg3: memref<2xf32, #tpu.memory_space<smem>>, %arg4: memref<112x1xf32, #tpu.memory_space<vmem>>, %arg5: memref<112x1xf32, #tpu.memory_space<vmem>>) attributes {dimension_semantics = [#tpu.dimension_semantics<parallel>], iteration_bounds = array<i64: 2>, scalar_prefetch = 0 : i64, scratch_operands = 0 : i64, tpu.core_type = #tpu.core_type<tc>, window_params = [{transform_indices = @transform_0, window_bounds = array<i64: 112, 64>}, {pipeline_mode = #tpu.pipeline_mode<synchronous>, transform_indices = @transform_1, window_bounds = array<i64: 2, 64>}, {transform_indices = @transform_2, window_bounds = array<i64: 2>}, {transform_indices = @transform_3, window_bounds = array<i64: 112, 1>}, {transform_indices = @transform_4, window_bounds = array<i64: 112, 1>}]} {
    %c0 = arith.constant 0 : index
    %c0_0 = arith.constant 0 : index
    %0 = vector.load %arg2[%c0, %c0_0] : memref<2x64xf32, #tpu.memory_space<vmem>>, vector<1x64xf32>
    %c1 = arith.constant 1 : index
    %c0_1 = arith.constant 0 : index
    %1 = vector.load %arg2[%c1, %c0_1] : memref<2x64xf32, #tpu.memory_space<vmem>>, vector<1x64xf32>
    %c0_2 = arith.constant 0 : index
    %2 = memref.load %arg3[%c0_2] : memref<2xf32, #tpu.memory_space<smem>>
    %c1_3 = arith.constant 1 : index
    %3 = memref.load %arg3[%c1_3] : memref<2xf32, #tpu.memory_space<smem>>
    %c0_4 = arith.constant 0 : index
    %c0_5 = arith.constant 0 : index
    %4 = vector.load %arg1[%c0_4, %c0_5] : memref<112x64xbf16, #tpu.memory_space<vmem>>, vector<112x64xbf16>
    %5 = arith.extf %4 : vector<112x64xbf16> to vector<112x64xf32>
    %6 = vector.broadcast %0 : vector<1x64xf32> to vector<112x64xf32>
    %7 = arith.mulf %5, %6 : vector<112x64xf32>
    %cst = arith.constant dense<0.000000e+00> : vector<112xf32>
    %8 = vector.multi_reduction <add>, %7, %cst [1] : vector<112x64xf32> to vector<112xf32>
    %9 = vector.shape_cast %8 : vector<112xf32> to vector<112x1xf32>
    %10 = vector.broadcast %2 : f32 to vector<112x1xf32>
    %11 = arith.addf %9, %10 : vector<112x1xf32>
    %12 = arith.mulf %5, %5 : vector<112x64xf32>
    %13 = vector.broadcast %1 : vector<1x64xf32> to vector<112x64xf32>
    %14 = arith.mulf %12, %13 : vector<112x64xf32>
    %cst_6 = arith.constant dense<0.000000e+00> : vector<112xf32>
    %15 = vector.multi_reduction <add>, %14, %cst_6 [1] : vector<112x64xf32> to vector<112xf32>
    %16 = vector.shape_cast %15 : vector<112xf32> to vector<112x1xf32>
    %17 = vector.broadcast %3 : f32 to vector<112x1xf32>
    %18 = arith.addf %16, %17 : vector<112x1xf32>
    %c0_7 = arith.constant 0 : index
    %c0_8 = arith.constant 0 : index
    %19 = vector.load %arg4[%c0_7, %c0_8] : memref<112x1xf32, #tpu.memory_space<vmem>>, vector<112x1xf32>
    %20 = math.sqrt %18 : vector<112x1xf32>
    %21 = arith.mulf %20, %19 : vector<112x1xf32>
    %22 = arith.addf %11, %21 : vector<112x1xf32>
    %cst_9 = arith.constant 5.000000e-01 : f32
    %23 = vector.broadcast %cst_9 : f32 to vector<112x1xf32>
    %24 = arith.mulf %23, %22 : vector<112x1xf32>
    %25 = math.tanh %24 : vector<112x1xf32>
    %cst_10 = arith.constant 1.000000e+00 : f32
    %26 = vector.broadcast %cst_10 : f32 to vector<112x1xf32>
    %27 = arith.addf %26, %25 : vector<112x1xf32>
    %cst_11 = arith.constant 5.000000e-01 : f32
    %28 = vector.broadcast %cst_11 : f32 to vector<112x1xf32>
    %29 = arith.mulf %28, %27 : vector<112x1xf32>
    %c0_12 = arith.constant 0 : index
    %c0_13 = arith.constant 0 : index
    %30 = vector.load %arg5[%c0_12, %c0_13] : memref<112x1xf32, #tpu.memory_space<vmem>>, vector<112x1xf32>
    tpu.vector_store %arg5[%c0_12, %c0_13], %29 {strides = array<i32>} : memref<112x1xf32, #tpu.memory_space<vmem>>, vector<112x1xf32>,
    return
  }
  func.func @transform_0(%arg0: i32) -> (i32, i32) {
    %c0_i32 = arith.constant 0 : i32
    %c0_i32_0 = arith.constant 0 : i32
    return %arg0, %c0_i32 : i32, i32
  }
  func.func @transform_1(%arg0: i32) -> (i32, i32) {
    %c0_i32 = arith.constant 0 : i32
    %c0_i32_0 = arith.constant 0 : i32
    %c0_i32_1 = arith.constant 0 : i32
    return %c0_i32, %c0_i32_0 : i32, i32
  }
  func.func @transform_2(%arg0: i32) -> i32 {
    %c0_i32 = arith.constant 0 : i32
    %c0_i32_0 = arith.constant 0 : i32
    return %c0_i32 : i32
  }
  func.func @transform_3(%arg0: i32) -> (i32, i32) {
    %c0_i32 = arith.constant 0 : i32
    %c0_i32_0 = arith.constant 0 : i32
    return %arg0, %c0_i32 : i32, i32
  }
  func.func @transform_4(%arg0: i32) -> (i32, i32) {
    %c0_i32 = arith.constant 0 : i32
    %c0_i32_0 = arith.constant 0 : i32
    return %arg0, %c0_i32 : i32, i32
  }
}

</mosaic_0001>

<llo_original>
// kernel: bayesian_network_forward.1
$region0: #{bayesian_network_forward.1}
  #allocation0 [shape = 'u32[]', space=smem, size = 0x4, offset = 0x4, fixed_abs, tag = 'smem constant byte address 0x4 - core index']
  #allocation1 [shape = 'u32[144,128]{1,0:T(1,128)}', space=vmem, size = 0x12000, scoped, tag = 'internal scratch']
  %s0 = inlined_call_operand.vmem [shape: bf16[224,64], index: 0, kind: input, shape index: {}]
  %s1 = inlined_call_operand.vmem [shape: f32[2,64], index: 1, kind: input, shape index: {}]
  %s2 = inlined_call_operand.vmem [shape: f32[2], index: 2, kind: input, shape index: {}]
  %s3 = inlined_call_operand.vmem [shape: f32[224,1], index: 3, kind: input, shape index: {}]
  %s4 = inlined_call_operand.vmem [shape: f32[224,1], index: 4, kind: output, shape index: {}]
  %s5 = sld [smem:[#allocation0]]
  $region53: #{bayesian_network_forward.1} parent=0
    _
  %s7 = ssub.s32 1, %s5
  %s8 = scalar_select 0, %s7, %s5
  $region1: #{bayesian_network_forward.1} parent=0
    #allocation2 [shape = 'u8[512]{0}', space=smem, size = 0x200, scoped, tag = 'input window, operand 2, single buffered']
    #allocation3 [shape = 's32[2]{0}', space=sflag, size = 0x8, scoped, tag = 'scoped memory for bayesian_network_forward.1']
    %9 = vsyncpa [#allocation3], 0
    loop: start=0, step=1, limit=4
    $region2: #{bayesian_network_forward.1} parent=1 // loop_pre_header
      _
    $region3: #{bayesian_network_forward.1} parent=1 // loop_header
      %s11 = sphi 0, %s15
      %p12 = scmp.ge.s32.totalorder %s11, 4
      %s21 = sphi 0, %s23
      %s24 = sphi 0, %s21
      %s25 = sphi 0, %s24
      %s41 = sphi 0, %s25
      %s45 = sphi 0, %s45
      %s47 = sphi 0, %s45
      %s48 = sphi 0, %s47
      %s62 = sphi 0, %s48
      %s66 = sphi 0, %s66
      %s68 = sphi 0, %s66
      %s69 = sphi 0, %s68
      %s83 = sphi 0, %s69
      %s89 = sphi 0, %s91
      %s92 = sphi 0, %s89
      %s93 = sphi 0, %s92
      %s109 = sphi 0, %s93
      %s115 = sphi 0, %s117
      %s118 = sphi 0, %s115
      %s119 = sphi 0, %s118
      %s135 = sphi 0, %s119
    $region4: #{bayesian_network_forward.1} parent=1 // loop_header_branch
      %14 = sbr.rel (%p12) target = $region8
    $region5: #{bayesian_network_forward.1} parent=1 // loop_body
      %s16 = ssub.s32 %s11, 1
      %s17 = ssub.s32 %s11, 2
      %s18 = sadd.s32 %s11, 1
      %s19 = ssub.s32 %s11, %s18
      %p20 = scmp.eq.s32.totalorder %s19, 0
      %s22 = sadd.s32 %s21, 1
      %s23 = scalar_select %p20, %s21, %s22
      %p26 = pneg %p20
      %p27 = scmp.eq.s32.totalorder %s11, 1
      %p28 = por %p26, %p27
      %p29 = scmp.ne.s32.totalorder %s21, %s24
      %p30 = scmp.eq.s32.totalorder %s11, 0
      %p31 = por %p29, %p30
      %p32 = scmp.ne.s32.totalorder %s21, %s24
      %p33 = scmp.eq.s32.totalorder %s16, 1
      %p34 = por %p32, %p33
      %p35 = scmp.ne.s32.totalorder %s24, %s25
      %p36 = scmp.eq.s32.totalorder %s16, 0
      %p37 = por %p35, %p36
      %p38 = scmp.ne.s32.totalorder %s24, %s25
      %p39 = scmp.eq.s32.totalorder %s17, 1
      %p40 = por %p38, %p39
      %p42 = scmp.ne.s32.totalorder %s25, %s41
      %p43 = scmp.eq.s32.totalorder %s17, 0
      %p44 = por %p42, %p43
      %s46 = sadd.s32 %s45, 1
      %p49 = scmp.eq.s32.totalorder %s11, 1
      %p50 = scmp.ne.s32.totalorder %s45, %s47
      %p51 = scmp.eq.s32.totalorder %s11, 0
      %p52 = por %p50, %p51
      %p53 = scmp.ne.s32.totalorder %s45, %s47
      %p54 = scmp.eq.s32.totalorder %s16, 1
      %p55 = por %p53, %p54
      %p56 = scmp.ne.s32.totalorder %s47, %s48
      %p57 = scmp.eq.s32.totalorder %s16, 0
      %p58 = por %p56, %p57
      %p59 = scmp.ne.s32.totalorder %s47, %s48
      %p60 = scmp.eq.s32.totalorder %s17, 1
      %p61 = por %p59, %p60
      %p63 = scmp.ne.s32.totalorder %s48, %s62
      %p64 = scmp.eq.s32.totalorder %s17, 0
      %p65 = por %p63, %p64
      %s67 = sadd.s32 %s66, 1
      %p70 = scmp.eq.s32.totalorder %s11, 1
      %p71 = scmp.ne.s32.totalorder %s66, %s68
      %p72 = scmp.eq.s32.totalorder %s11, 0
      %p73 = por %p71, %p72
      %p74 = scmp.ne.s32.totalorder %s66, %s68
      %p75 = scmp.eq.s32.totalorder %s16, 1
      %p76 = por %p74, %p75
      %p77 = scmp.ne.s32.totalorder %s68, %s69
      %p78 = scmp.eq.s32.totalorder %s16, 0
      %p79 = por %p77, %p78
      %p80 = scmp.ne.s32.totalorder %s68, %s69
      %p81 = scmp.eq.s32.totalorder %s17, 1
      %p82 = por %p80, %p81
      %p84 = scmp.ne.s32.totalorder %s69, %s83
      %p85 = scmp.eq.s32.totalorder %s17, 0
      %p86 = por %p84, %p85
      %s87 = ssub.s32 %s11, %s18
      %p88 = scmp.eq.s32.totalorder %s87, 0
      %s90 = sadd.s32 %s89, 1
      %s91 = scalar_select %p88, %s89, %s90
      %p94 = pneg %p88
      %p95 = scmp.eq.s32.totalorder %s11, 1
      %p96 = por %p94, %p95
      %p97 = scmp.ne.s32.totalorder %s89, %s92
      %p98 = scmp.eq.s32.totalorder %s11, 0
      %p99 = por %p97, %p98
      %p100 = scmp.ne.s32.totalorder %s89, %s92
      %p101 = scmp.eq.s32.totalorder %s16, 1
      %p102 = por %p100, %p101
      %p103 = scmp.ne.s32.totalorder %s92, %s93
      %p104 = scmp.eq.s32.totalorder %s16, 0
      %p105 = por %p103, %p104
      %p106 = scmp.ne.s32.totalorder %s92, %s93
      %p107 = scmp.eq.s32.totalorder %s17, 1
      %p108 = por %p106, %p107
      %p110 = scmp.ne.s32.totalorder %s93, %s109
      %p111 = scmp.eq.s32.totalorder %s17, 0
      %p112 = por %p110, %p111
      %s113 = ssub.s32 %s11, %s18
      %p114 = scmp.eq.s32.totalorder %s113, 0
      %s116 = sadd.s32 %s115, 1
      %s117 = scalar_select %p114, %s115, %s116
      %p120 = pneg %p114
      %p121 = scmp.eq.s32.totalorder %s11, 1
      %p122 = por %p120, %p121
      %p123 = scmp.ne.s32.totalorder %s115, %s118
      %p124 = scmp.eq.s32.totalorder %s11, 0
      %p125 = por %p123, %p124
      %p126 = scmp.ne.s32.totalorder %s115, %s118
      %p127 = scmp.eq.s32.totalorder %s16, 1
      %p128 = por %p126, %p127
      %p129 = scmp.ne.s32.totalorder %s118, %s119
      %p130 = scmp.eq.s32.totalorder %s16, 0
      %p131 = por %p129, %p130
      %p132 = scmp.ne.s32.totalorder %s118, %s119
      %p133 = scmp.eq.s32.totalorder %s17, 1
      %p134 = por %p132, %p133
      %p136 = scmp.ne.s32.totalorder %s119, %s135
      %p137 = scmp.eq.s32.totalorder %s17, 0
      %p138 = por %p136, %p137
      %p139 = scmp.le.s32.totalorder 1, %s11
      %p140 = scmp.lt.s32.totalorder %s11, 3
      %p141 = pnand %p139, %p140
      %p142 = pneg %p141
      // Predicated region
      $region9: #{bayesian_network_forward.1} parent=5 // pred_check
        _
      $region10: #{bayesian_network_forward.1} parent=5 // pred_check_branch
        %144 = sbr.rel (%p141) target = $region12
      $region11: #{bayesian_network_forward.1} parent=5 // pred_region
        %s145 = ssub.s32 %s11, 1
        // Predicated region
        $region13: #{bayesian_network_forward.1} parent=11 // pred_check
          %p146 = pneg %p58
        $region14: #{bayesian_network_forward.1} parent=11 // pred_check_branch
          %148 = sbr.rel (%p146) target = $region16
        $region15: #{bayesian_network_forward.1} parent=11 // pred_region
          _
        $region16: #{bayesian_network_forward.1} parent=11 // pred_fallthru
          _
        // Predicated region
        $region17: #{bayesian_network_forward.1} parent=11 // pred_check
          %p149 = pneg %p79
        $region18: #{bayesian_network_forward.1} parent=11 // pred_check_branch
          %151 = sbr.rel (%p149) target = $region20
        $region19: #{bayesian_network_forward.1} parent=11 // pred_region
          %s153 = ssub.s32 16, 16
          %154 = vsyncadd [#allocation3], %s153
          %s156 = sshll.u32 %s2, 4
          %s157 = int_to_ptr.vmem [resolvable:$true] %s156
          %159 = dma.vmem_to_smem %s157, 16, [#allocation2], [#allocation3]
        $region20: #{bayesian_network_forward.1} parent=11 // pred_fallthru
          _
      $region12: #{bayesian_network_forward.1} parent=5 // pred_fallthru
        _
      %p160 = scmp.lt.s32.totalorder %s11, 2
      // Predicated region
      $region21: #{bayesian_network_forward.1} parent=5 // pred_check
        %p161 = pneg %p160
      $region22: #{bayesian_network_forward.1} parent=5 // pred_check_branch
        %163 = sbr.rel (%p161) target = $region24
      $region23: #{bayesian_network_forward.1} parent=5 // pred_region
        // Predicated region
        $region25: #{bayesian_network_forward.1} parent=23 // pred_check
          %p164 = pneg %p31
        $region26: #{bayesian_network_forward.1} parent=23 // pred_check_branch
          %166 = sbr.rel (%p164) target = $region28
        $region27: #{bayesian_network_forward.1} parent=23 // pred_region
          %s167 = smul.u32 14, %s11
          %p168 = scmp.lt.s32.totalorder %s167, 27
          %s169 = scalar_select %p168, %s167, 27
          %s170 = smul.addr %s169, 4
          %s171 = scalar_lea.vmem %s0, %s170
          %s172 = smul.u32 14, %s11
        $region28: #{bayesian_network_forward.1} parent=23 // pred_fallthru
          _
        // Predicated region
        $region29: #{bayesian_network_forward.1} parent=23 // pred_check
          %p173 = pneg %p99
        $region30: #{bayesian_network_forward.1} parent=23 // pred_check_branch
          %175 = sbr.rel (%p173) target = $region32
        $region31: #{bayesian_network_forward.1} parent=23 // pred_region
          %s176 = smul.u32 14, %s11
          %p177 = scmp.lt.s32.totalorder %s176, 27
          %s178 = scalar_select %p177, %s176, 27
          %s179 = smul.addr %s178, 8
          %s180 = scalar_lea.vmem %s3, %s179
          %s181 = smul.u32 14, %s11
        $region32: #{bayesian_network_forward.1} parent=23 // pred_fallthru
          _
      $region24: #{bayesian_network_forward.1} parent=5 // pred_fallthru
        _
      %p182 = scmp.le.s32.totalorder 1, %s11
      %p183 = scmp.lt.s32.totalorder %s11, 3
      %p184 = pnand %p182, %p183
      %p185 = pneg %p184
      // Predicated region
      $region33: #{bayesian_network_forward.1} parent=5 // pred_check
        _
      $region34: #{bayesian_network_forward.1} parent=5 // pred_check_branch
        %187 = sbr.rel (%p184) target = $region36
      $region35: #{bayesian_network_forward.1} parent=5 // pred_region
        %s188 = ssub.s32 %s11, 1
        // Predicated region
        $region37: #{bayesian_network_forward.1} parent=35 // pred_check
          %p189 = pneg %p79
        $region38: #{bayesian_network_forward.1} parent=35 // pred_check_branch
          %191 = sbr.rel (%p189) target = $region40
        $region39: #{bayesian_network_forward.1} parent=35 // pred_region
          %192 = dma.done [#allocation3], 16
        $region40: #{bayesian_network_forward.1} parent=35 // pred_fallthru
          _
        %193 = sfence
        %s194 = smul.u32 14, %s16
        %p195 = scmp.lt.s32.totalorder %s194, 27
        %s196 = scalar_select %p195, %s194, 27
        %s197 = smul.addr %s196, 4
        %s198 = scalar_lea.vmem %s0, %s197
        %p199 = pneg %p37
        %p200 = pneg %p34
        %p201 = pneg %p58
        %p202 = pneg %p55
        %p203 = pneg %p79
        %p204 = pneg %p76
        %s205 = smul.u32 14, %s16
        %p206 = scmp.lt.s32.totalorder %s205, 27
        %s207 = scalar_select %p206, %s205, 27
        %s208 = smul.addr %s207, 8
        %s209 = scalar_lea.vmem %s3, %s208
        %p210 = pneg %p105
        %p211 = pneg %p102
        %p212 = pneg %p131
        %p213 = pneg %p128
        %s214 = smul.u32 14, %s16
        %p215 = scmp.lt.s32.totalorder %s214, 27
        %s216 = scalar_select %p215, %s214, 27
        %s217 = smul.addr %s216, 8
        %s218 = scalar_lea.vmem %s4, %s217
        %s219 = smul.u32 14, %s16
        %p220 = scmp.lt.s32.totalorder %s219, 27
        %s221 = scalar_select %p220, %s219, 27
        %s222 = smul.addr %s221, 4
        %s223 = scalar_lea.vmem %s0, %s222
        %s224 = smul.u32 14, %s16
        %s225 = smul.u32 14, %s16
        %p226 = scmp.lt.s32.totalorder %s225, 27
        %s227 = scalar_select %p226, %s225, 27
        %s228 = smul.addr %s227, 8
        %s229 = scalar_lea.vmem %s3, %s228
        %s230 = smul.u32 14, %s16
        %s231 = smul.u32 14, %s16
        %p232 = scmp.lt.s32.totalorder %s231, 27
        %s233 = scalar_select %p232, %s231, 27
        %s234 = smul.addr %s233, 8
        %s235 = scalar_lea.vmem %s4, %s234
        %s236 = smul.u32 14, %s16
        %v237 = vld [vmem:[%s1] sm:$0x1]
        %v238 = vld [vmem:[%s1 + $0x1] sm:$0x1]
        %s239 = sld [smem:[#allocation2]]
        %s240 = sld [smem:[#allocation2 + $0x1]]
        %v241 = vld [vmem:[%s223] sm:$0xf]
        %v242 = vld [vmem:[%s223 + $0x4] sm:$0xf]
        %v243 = vld [vmem:[%s223 + $0x8] sm:$0xf]
        %v244 = vld [vmem:[%s223 + $0xc] sm:$0xf]
        %v245 = vld [vmem:[%s223 + $0x10] sm:$0xf]
        %v246 = vld [vmem:[%s223 + $0x14] sm:$0xf]
        %v247 = vld [vmem:[%s223 + $0x18] sm:$0xf]
        %v248 = vld [vmem:[%s223 + $0x1c] sm:$0xf]
        %v249 = vld [vmem:[%s223 + $0x20] sm:$0xf]
        %v250 = vld [vmem:[%s223 + $0x24] sm:$0xf]
        %v251 = vld [vmem:[%s223 + $0x28] sm:$0xf]
        %v252 = vld [vmem:[%s223 + $0x2c] sm:$0xf]
        %v253 = vld [vmem:[%s223 + $0x30] sm:$0xf]
        %v254 = vld [vmem:[%s223 + $0x34] sm:$0xf]
        %v255 = vunpack.c.l.bf16 %v241
        %v256 = vunpack.c.l.bf16 %v242
        %v257 = vunpack.c.l.bf16 %v243
        %v258 = vunpack.c.l.bf16 %v244
        %v259 = vunpack.c.l.bf16 %v245
        %v260 = vunpack.c.l.bf16 %v246
        %v261 = vunpack.c.l.bf16 %v247
        %v262 = vunpack.c.l.bf16 %v248
        %v263 = vunpack.c.l.bf16 %v249
        %v264 = vunpack.c.l.bf16 %v250
        %v265 = vunpack.c.l.bf16 %v251
        %v266 = vunpack.c.l.bf16 %v252
        %v267 = vunpack.c.l.bf16 %v253
        %v268 = vunpack.c.l.bf16 %v254
        %v269 = vlaneseq
        %v270 = vshrl.u32 %v269, 7
        %v271 = vsub.s32 0, %v270
        %v272 = vrot.slane %v237, %v271
        %v273 = vmul.f32 %v255, %v272
        %v274 = vmul.f32 %v256, %v272
        %v275 = vmul.f32 %v257, %v272
        %v276 = vmul.f32 %v258, %v272
        %v277 = vmul.f32 %v259, %v272
        %v278 = vmul.f32 %v260, %v272
        %v279 = vmul.f32 %v261, %v272
        %v280 = vmul.f32 %v262, %v272
        %v281 = vmul.f32 %v263, %v272
        %v282 = vmul.f32 %v264, %v272
        %v283 = vmul.f32 %v265, %v272
        %v284 = vmul.f32 %v266, %v272
        %v285 = vmul.f32 %v267, %v272
        %v286 = vmul.f32 %v268, %v272
        %vm287 = vcmask 523264
        %v288 = vsel %vm287, %v273, 0.0
        %289 = vadd.xlane.f32.xlu0 %v288
        %v290 = vpop.xlane.xlu0 %289
        %v291 = vsel %vm287, %v274, 0.0
        %292 = vadd.xlane.f32.xlu0 %v291
        %v293 = vpop.xlane.xlu0 %292
        %v294 = vsel %vm287, %v275, 0.0
        %295 = vadd.xlane.f32.xlu0 %v294
        %v296 = vpop.xlane.xlu0 %295
        %v297 = vsel %vm287, %v276, 0.0
        %298 = vadd.xlane.f32.xlu0 %v297
        %v299 = vpop.xlane.xlu0 %298
        %v300 = vsel %vm287, %v277, 0.0
        %301 = vadd.xlane.f32.xlu0 %v300
        %v302 = vpop.xlane.xlu0 %301
        %v303 = vsel %vm287, %v278, 0.0
        %304 = vadd.xlane.f32.xlu0 %v303
        %v305 = vpop.xlane.xlu0 %304
        %v306 = vsel %vm287, %v279, 0.0
        %307 = vadd.xlane.f32.xlu0 %v306
        %v308 = vpop.xlane.xlu0 %307
        %v309 = vsel %vm287, %v280, 0.0
        %310 = vadd.xlane.f32.xlu0 %v309
        %v311 = vpop.xlane.xlu0 %310
        %v312 = vsel %vm287, %v281, 0.0
        %313 = vadd.xlane.f32.xlu0 %v312
        %v314 = vpop.xlane.xlu0 %313
        %v315 = vsel %vm287, %v282, 0.0
        %316 = vadd.xlane.f32.xlu0 %v315
        %v317 = vpop.xlane.xlu0 %316
        %v318 = vsel %vm287, %v283, 0.0
        %319 = vadd.xlane.f32.xlu0 %v318
        %v320 = vpop.xlane.xlu0 %319
        %v321 = vsel %vm287, %v284, 0.0
        %322 = vadd.xlane.f32.xlu0 %v321
        %v323 = vpop.xlane.xlu0 %322
        %v324 = vsel %vm287, %v285, 0.0
        %325 = vadd.xlane.f32.xlu0 %v324
        %v326 = vpop.xlane.xlu0 %325
        %v327 = vsel %vm287, %v286, 0.0
        %328 = vadd.xlane.f32.xlu0 %v327
        %v329 = vpop.xlane.xlu0 %328
        %v330 = vstv %s239
        %v331 = vadd.f32 %v290, %v330
        %v332 = vadd.f32 %v293, %v330
        %v333 = vadd.f32 %v296, %v330
        %v334 = vadd.f32 %v299, %v330
        %v335 = vadd.f32 %v302, %v330
        %v336 = vadd.f32 %v305, %v330
        %v337 = vadd.f32 %v308, %v330
        %v338 = vadd.f32 %v311, %v330
        %v339 = vadd.f32 %v314, %v330
        %v340 = vadd.f32 %v317, %v330
        %v341 = vadd.f32 %v320, %v330
        %v342 = vadd.f32 %v323, %v330
        %v343 = vadd.f32 %v326, %v330
        %v344 = vadd.f32 %v329, %v330
        %v345 = vmul.f32 %v255, %v255
        %v346 = vmul.f32 %v256, %v256
        %v347 = vmul.f32 %v257, %v257
        %v348 = vmul.f32 %v258, %v258
        %v349 = vmul.f32 %v259, %v259
        %v350 = vmul.f32 %v260, %v260
        %v351 = vmul.f32 %v261, %v261
        %v352 = vmul.f32 %v262, %v262
        %v353 = vmul.f32 %v263, %v263
        %v354 = vmul.f32 %v264, %v264
        %v355 = vmul.f32 %v265, %v265
        %v356 = vmul.f32 %v266, %v266
        %v357 = vmul.f32 %v267, %v267
        %v358 = vmul.f32 %v268, %v268
        %v359 = vlaneseq
        %v360 = vshrl.u32 %v359, 7
        %v361 = vsub.s32 0, %v360
        %v362 = vrot.slane %v238, %v361
        %v363 = vmul.f32 %v345, %v362
        %v364 = vmul.f32 %v346, %v362
        %v365 = vmul.f32 %v347, %v362
        %v366 = vmul.f32 %v348, %v362
        %v367 = vmul.f32 %v349, %v362
        %v368 = vmul.f32 %v350, %v362
        %v369 = vmul.f32 %v351, %v362
        %v370 = vmul.f32 %v352, %v362
        %v371 = vmul.f32 %v353, %v362
        %v372 = vmul.f32 %v354, %v362
        %v373 = vmul.f32 %v355, %v362
        %v374 = vmul.f32 %v356, %v362
        %v375 = vmul.f32 %v357, %v362
        %v376 = vmul.f32 %v358, %v362
        %v377 = vsel %vm287, %v363, 0.0
        %378 = vadd.xlane.f32.xlu0 %v377
        %v379 = vpop.xlane.xlu0 %378
        %v380 = vsel %vm287, %v364, 0.0
        %381 = vadd.xlane.f32.xlu0 %v380
        %v382 = vpop.xlane.xlu0 %381
        %v383 = vsel %vm287, %v365, 0.0
        %384 = vadd.xlane.f32.xlu0 %v383
        %v385 = vpop.xlane.xlu0 %384
        %v386 = vsel %vm287, %v366, 0.0
        %387 = vadd.xlane.f32.xlu0 %v386
        %v388 = vpop.xlane.xlu0 %387
        %v389 = vsel %vm287, %v367, 0.0
        %390 = vadd.xlane.f32.xlu0 %v389
        %v391 = vpop.xlane.xlu0 %390
        %v392 = vsel %vm287, %v368, 0.0
        %393 = vadd.xlane.f32.xlu0 %v392
        %v394 = vpop.xlane.xlu0 %393
        %v395 = vsel %vm287, %v369, 0.0
        %396 = vadd.xlane.f32.xlu0 %v395
        %v397 = vpop.xlane.xlu0 %396
        %v398 = vsel %vm287, %v370, 0.0
        %399 = vadd.xlane.f32.xlu0 %v398
        %v400 = vpop.xlane.xlu0 %399
        %v401 = vsel %vm287, %v371, 0.0
        %402 = vadd.xlane.f32.xlu0 %v401
        %v403 = vpop.xlane.xlu0 %402
        %v404 = vsel %vm287, %v372, 0.0
        %405 = vadd.xlane.f32.xlu0 %v404
        %v406 = vpop.xlane.xlu0 %405
        %v407 = vsel %vm287, %v373, 0.0
        %408 = vadd.xlane.f32.xlu0 %v407
        %v409 = vpop.xlane.xlu0 %408
        %v410 = vsel %vm287, %v374, 0.0
        %411 = vadd.xlane.f32.xlu0 %v410
        %v412 = vpop.xlane.xlu0 %411
        %v413 = vsel %vm287, %v375, 0.0
        %414 = vadd.xlane.f32.xlu0 %v413
        %v415 = vpop.xlane.xlu0 %414
        %v416 = vsel %vm287, %v376, 0.0
        %417 = vadd.xlane.f32.xlu0 %v416
        %v418 = vpop.xlane.xlu0 %417
        %v419 = vstv %s240
        %v420 = vadd.f32 %v379, %v419
        %v421 = vadd.f32 %v382, %v419
        %v422 = vadd.f32 %v385, %v419
        %v423 = vadd.f32 %v388, %v419
        %v424 = vadd.f32 %v391, %v419
        %v425 = vadd.f32 %v394, %v419
        %v426 = vadd.f32 %v397, %v419
        %v427 = vadd.f32 %v400, %v419
        %v428 = vadd.f32 %v403, %v419
        %v429 = vadd.f32 %v406, %v419
        %v430 = vadd.f32 %v409, %v419
        %v431 = vadd.f32 %v412, %v419
        %v432 = vadd.f32 %v415, %v419
        %v433 = vadd.f32 %v418, %v419
        %v434 = vld [vmem:[%s229] sm:$0xff]
        %v435 = vld [vmem:[%s229 + $0x8] sm:$0xff]
        %v436 = vld [vmem:[%s229 + $0x10] sm:$0xff]
        %v437 = vld [vmem:[%s229 + $0x18] sm:$0xff]
        %v438 = vld [vmem:[%s229 + $0x20] sm:$0xff]
        %v439 = vld [vmem:[%s229 + $0x28] sm:$0xff]
        %v440 = vld [vmem:[%s229 + $0x30] sm:$0xff]
        %v441 = vld [vmem:[%s229 + $0x38] sm:$0xff]
        %v442 = vld [vmem:[%s229 + $0x40] sm:$0xff]
        %v443 = vld [vmem:[%s229 + $0x48] sm:$0xff]
        %v444 = vld [vmem:[%s229 + $0x50] sm:$0xff]
        %v445 = vld [vmem:[%s229 + $0x58] sm:$0xff]
        %v446 = vld [vmem:[%s229 + $0x60] sm:$0xff]
        %v447 = vld [vmem:[%s229 + $0x68] sm:$0xff]
        %v448 = vrsqrt.pop %v420
        %v449 = vmul.f32 %v420, %v448
        %vm450 = vcmp.eq.f32.partialorder %v420, inf
        %v451 = vsel %vm450, %v420, %v449
        %vm452 = vcmp.eq.f32.partialorder %v420, 0.0
        %v453 = vand.u32 %v420, 2147483648
        %v454 = vsel %vm452, %v453, %v451
        %v455 = vrsqrt.pop %v421
        %v456 = vmul.f32 %v421, %v455
        %vm457 = vcmp.eq.f32.partialorder %v421, inf
        %v458 = vsel %vm457, %v421, %v456
        %vm459 = vcmp.eq.f32.partialorder %v421, 0.0
        %v460 = vand.u32 %v421, 2147483648
        %v461 = vsel %vm459, %v460, %v458
        %v462 = vrsqrt.pop %v422
        %v463 = vmul.f32 %v422, %v462
        %vm464 = vcmp.eq.f32.partialorder %v422, inf
        %v465 = vsel %vm464, %v422, %v463
        %vm466 = vcmp.eq.f32.partialorder %v422, 0.0
        %v467 = vand.u32 %v422, 2147483648
        %v468 = vsel %vm466, %v467, %v465
        %v469 = vrsqrt.pop %v423
        %v470 = vmul.f32 %v423, %v469
        %vm471 = vcmp.eq.f32.partialorder %v423, inf
        %v472 = vsel %vm471, %v423, %v470
        %vm473 = vcmp.eq.f32.partialorder %v423, 0.0
        %v474 = vand.u32 %v423, 2147483648
        %v475 = vsel %vm473, %v474, %v472
        %v476 = vrsqrt.pop %v424
        %v477 = vmul.f32 %v424, %v476
        %vm478 = vcmp.eq.f32.partialorder %v424, inf
        %v479 = vsel %vm478, %v424, %v477
        %vm480 = vcmp.eq.f32.partialorder %v424, 0.0
        %v481 = vand.u32 %v424, 2147483648
        %v482 = vsel %vm480, %v481, %v479
        %v483 = vrsqrt.pop %v425
        %v484 = vmul.f32 %v425, %v483
        %vm485 = vcmp.eq.f32.partialorder %v425, inf
        %v486 = vsel %vm485, %v425, %v484
        %vm487 = vcmp.eq.f32.partialorder %v425, 0.0
        %v488 = vand.u32 %v425, 2147483648
        %v489 = vsel %vm487, %v488, %v486
        %v490 = vrsqrt.pop %v426
        %v491 = vmul.f32 %v426, %v490
        %vm492 = vcmp.eq.f32.partialorder %v426, inf
        %v493 = vsel %vm492, %v426, %v491
        %vm494 = vcmp.eq.f32.partialorder %v426, 0.0
        %v495 = vand.u32 %v426, 2147483648
        %v496 = vsel %vm494, %v495, %v493
        %v497 = vrsqrt.pop %v427
        %v498 = vmul.f32 %v427, %v497
        %vm499 = vcmp.eq.f32.partialorder %v427, inf
        %v500 = vsel %vm499, %v427, %v498
        %vm501 = vcmp.eq.f32.partialorder %v427, 0.0
        %v502 = vand.u32 %v427, 2147483648
        %v503 = vsel %vm501, %v502, %v500
        %v504 = vrsqrt.pop %v428
        %v505 = vmul.f32 %v428, %v504
        %vm506 = vcmp.eq.f32.partialorder %v428, inf
        %v507 = vsel %vm506, %v428, %v505
        %vm508 = vcmp.eq.f32.partialorder %v428, 0.0
        %v509 = vand.u32 %v428, 2147483648
        %v510 = vsel %vm508, %v509, %v507
        %v511 = vrsqrt.pop %v429
        %v512 = vmul.f32 %v429, %v511
        %vm513 = vcmp.eq.f32.partialorder %v429, inf
        %v514 = vsel %vm513, %v429, %v512
        %vm515 = vcmp.eq.f32.partialorder %v429, 0.0
        %v516 = vand.u32 %v429, 2147483648
        %v517 = vsel %vm515, %v516, %v514
        %v518 = vrsqrt.pop %v430
        %v519 = vmul.f32 %v430, %v518
        %vm520 = vcmp.eq.f32.partialorder %v430, inf
        %v521 = vsel %vm520, %v430, %v519
        %vm522 = vcmp.eq.f32.partialorder %v430, 0.0
        %v523 = vand.u32 %v430, 2147483648
        %v524 = vsel %vm522, %v523, %v521
        %v525 = vrsqrt.pop %v431
        %v526 = vmul.f32 %v431, %v525
        %vm527 = vcmp.eq.f32.partialorder %v431, inf
        %v528 = vsel %vm527, %v431, %v526
        %vm529 = vcmp.eq.f32.partialorder %v431, 0.0
        %v530 = vand.u32 %v431, 2147483648
        %v531 = vsel %vm529, %v530, %v528
        %v532 = vrsqrt.pop %v432
        %v533 = vmul.f32 %v432, %v532
        %vm534 = vcmp.eq.f32.partialorder %v432, inf
        %v535 = vsel %vm534, %v432, %v533
        %vm536 = vcmp.eq.f32.partialorder %v432, 0.0
        %v537 = vand.u32 %v432, 2147483648
        %v538 = vsel %vm536, %v537, %v535
        %v539 = vrsqrt.pop %v433
        %v540 = vmul.f32 %v433, %v539
        %vm541 = vcmp.eq.f32.partialorder %v433, inf
        %v542 = vsel %vm541, %v433, %v540
        %vm543 = vcmp.eq.f32.partialorder %v433, 0.0
        %v544 = vand.u32 %v433, 2147483648
        %v545 = vsel %vm543, %v544, %v542
        %v546 = vmul.f32 %v454, %v434
        %v547 = vmul.f32 %v461, %v435
        %v548 = vmul.f32 %v468, %v436
        %v549 = vmul.f32 %v475, %v437
        %v550 = vmul.f32 %v482, %v438
        %v551 = vmul.f32 %v489, %v439
        %v552 = vmul.f32 %v496, %v440
        %v553 = vmul.f32 %v503, %v441
        %v554 = vmul.f32 %v510, %v442
        %v555 = vmul.f32 %v517, %v443
        %v556 = vmul.f32 %v524, %v444
        %v557 = vmul.f32 %v531, %v445
        %v558 = vmul.f32 %v538, %v446
        %v559 = vmul.f32 %v545, %v447
        %v560 = vadd.f32 %v331, %v546
        %v561 = vadd.f32 %v332, %v547
        %v562 = vadd.f32 %v333, %v548
        %v563 = vadd.f32 %v334, %v549
        %v564 = vadd.f32 %v335, %v550
        %v565 = vadd.f32 %v336, %v551
        %v566 = vadd.f32 %v337, %v552
        %v567 = vadd.f32 %v338, %v553
        %v568 = vadd.f32 %v339, %v554
        %v569 = vadd.f32 %v340, %v555
        %v570 = vadd.f32 %v341, %v556
        %v571 = vadd.f32 %v342, %v557
        %v572 = vadd.f32 %v343, %v558
        %v573 = vadd.f32 %v344, %v559
        %v574 = vmul.f32 %v560, 0.5
        %v575 = vmul.f32 %v561, 0.5
        %v576 = vmul.f32 %v562, 0.5
        %v577 = vmul.f32 %v563, 0.5
        %v578 = vmul.f32 %v564, 0.5
        %v579 = vmul.f32 %v565, 0.5
        %v580 = vmul.f32 %v566, 0.5
        %v581 = vmul.f32 %v567, 0.5
        %v582 = vmul.f32 %v568, 0.5
        %v583 = vmul.f32 %v569, 0.5
        %v584 = vmul.f32 %v570, 0.5
        %v585 = vmul.f32 %v571, 0.5
        %v586 = vmul.f32 %v572, 0.5
        %v587 = vmul.f32 %v573, 0.5
        %v588 = vtanh.pop %v574
        %v589 = vtanh.pop %v575
        %v590 = vtanh.pop %v576
        %v591 = vtanh.pop %v577
        %v592 = vtanh.pop %v578
        %v593 = vtanh.pop %v579
        %v594 = vtanh.pop %v580
        %v595 = vtanh.pop %v581
        %v596 = vtanh.pop %v582
        %v597 = vtanh.pop %v583
        %v598 = vtanh.pop %v584
        %v599 = vtanh.pop %v585
        %v600 = vtanh.pop %v586
        %v601 = vtanh.pop %v587
        %v602 = vadd.f32 %v588, 1.0
        %v603 = vadd.f32 %v589, 1.0
        %v604 = vadd.f32 %v590, 1.0
        %v605 = vadd.f32 %v591, 1.0
        %v606 = vadd.f32 %v592, 1.0
        %v607 = vadd.f32 %v593, 1.0
        %v608 = vadd.f32 %v594, 1.0
        %v609 = vadd.f32 %v595, 1.0
        %v610 = vadd.f32 %v596, 1.0
        %v611 = vadd.f32 %v597, 1.0
        %v612 = vadd.f32 %v598, 1.0
        %v613 = vadd.f32 %v599, 1.0
        %v614 = vadd.f32 %v600, 1.0
        %v615 = vadd.f32 %v601, 1.0
        %v616 = vmul.f32 %v602, 0.5
        %v617 = vmul.f32 %v603, 0.5
        %v618 = vmul.f32 %v604, 0.5
        %v619 = vmul.f32 %v605, 0.5
        %v620 = vmul.f32 %v606, 0.5
        %v621 = vmul.f32 %v607, 0.5
        %v622 = vmul.f32 %v608, 0.5
        %v623 = vmul.f32 %v609, 0.5
        %v624 = vmul.f32 %v610, 0.5
        %v625 = vmul.f32 %v611, 0.5
        %v626 = vmul.f32 %v612, 0.5
        %v627 = vmul.f32 %v613, 0.5
        %v628 = vmul.f32 %v614, 0.5
        %v629 = vmul.f32 %v615, 0.5
        %vm630 = vcmask 7168
        %631 = vst.msk [vmem:[%s235] sm:$0xff] %vm630, %v616
        %632 = vst.msk [vmem:[%s235 + $0x8] sm:$0xff] %vm630, %v617
        %633 = vst.msk [vmem:[%s235 + $0x10] sm:$0xff] %vm630, %v618
        %634 = vst.msk [vmem:[%s235 + $0x18] sm:$0xff] %vm630, %v619
        %635 = vst.msk [vmem:[%s235 + $0x20] sm:$0xff] %vm630, %v620
        %636 = vst.msk [vmem:[%s235 + $0x28] sm:$0xff] %vm630, %v621
        %637 = vst.msk [vmem:[%s235 + $0x30] sm:$0xff] %vm630, %v622
        %638 = vst.msk [vmem:[%s235 + $0x38] sm:$0xff] %vm630, %v623
        %639 = vst.msk [vmem:[%s235 + $0x40] sm:$0xff] %vm630, %v624
        %640 = vst.msk [vmem:[%s235 + $0x48] sm:$0xff] %vm630, %v625
        %641 = vst.msk [vmem:[%s235 + $0x50] sm:$0xff] %vm630, %v626
        %642 = vst.msk [vmem:[%s235 + $0x58] sm:$0xff] %vm630, %v627
        %643 = vst.msk [vmem:[%s235 + $0x60] sm:$0xff] %vm630, %v628
        %644 = vst.msk [vmem:[%s235 + $0x68] sm:$0xff] %vm630, %v629
        %s645 = smul.u32 14, %s16
        %p646 = scmp.lt.s32.totalorder %s645, 27
        %s647 = scalar_select %p646, %s645, 27
        %s648 = smul.addr %s647, 8
        %s649 = scalar_lea.vmem %s4, %s648
        // Predicated region
        $region41: #{bayesian_network_forward.1} parent=35 // pred_check
          %p650 = pneg %p128
        $region42: #{bayesian_network_forward.1} parent=35 // pred_check_branch
          %652 = sbr.rel (%p650) target = $region44
        $region43: #{bayesian_network_forward.1} parent=35 // pred_region
          %s653 = smul.u32 14, %s16
        $region44: #{bayesian_network_forward.1} parent=35 // pred_fallthru
          _
      $region36: #{bayesian_network_forward.1} parent=5 // pred_fallthru
        _
      %p654 = scmp.le.s32.totalorder 2, %s11
      // Predicated region
      $region45: #{bayesian_network_forward.1} parent=5 // pred_check
        %p655 = pneg %p654
      $region46: #{bayesian_network_forward.1} parent=5 // pred_check_branch
        %657 = sbr.rel (%p655) target = $region48
      $region47: #{bayesian_network_forward.1} parent=5 // pred_region
        %s658 = ssub.s32 %s11, 2
        // Predicated region
        $region49: #{bayesian_network_forward.1} parent=47 // pred_check
          %p659 = pneg %p134
        $region50: #{bayesian_network_forward.1} parent=47 // pred_check_branch
          %661 = sbr.rel (%p659) target = $region52
        $region51: #{bayesian_network_forward.1} parent=47 // pred_region
          %s662 = smul.u32 14, %s17
          %p663 = scmp.lt.s32.totalorder %s662, 27
          %s664 = scalar_select %p663, %s662, 27
          %s665 = smul.addr %s664, 8
          %s666 = scalar_lea.vmem %s4, %s665
        $region52: #{bayesian_network_forward.1} parent=47 // pred_fallthru
          _
      $region48: #{bayesian_network_forward.1} parent=5 // pred_fallthru
        _
    $region6: #{bayesian_network_forward.1} parent=1 // loop_footer
      %s15 = sadd.s32 1, %s11
    $region7: #{bayesian_network_forward.1} parent=1 // loop_footer_branch
      %10 = sbr.rel target = $region3
    $region8: #{bayesian_network_forward.1} parent=1 // loop_exit
      _
    %667 = vsyncpa [#allocation3], 1
    %s668 = scalar_lea.sflag [#allocation3], 1
    %669 = vsyncpa %s668, 1

</llo_original>
